<compile_context>
chip_gen: v5e
topology: v5e:2x2
jax: 0.10.0
libtpu: 0.0.40
codegen_flags: <defaults>
</compile_context>

<pallas_src>
import jax
import jax.numpy as jnp
from jax.experimental import pallas as pl
from jax.experimental.pallas import tpu as pltpu

BBOX_PRED_LOSS_WEIGHT = 10.0  # opt.bbox_pred_loss_weight (deterministic synthetic value)

LANE = 128           # lane width: last dim of every block
NCORES = 2           # leading "parallel" grid axis (dual TC on v7x; sequential elsewhere)
MAX_TILE_ROWS = 512  # 512 x 128 x 4B = 256 KiB per input per buffer


def _round_up(x, m):
    return ((x + m - 1) // m) * m


def _graph_loss_sum_kernel(bp_ref, bg_ref, m_ref, out_ref):
    # bp/bg/m: (TILE, 128) f32 lane-dense slabs; out: (1, 1, 128) f32 per-lane accumulator.
    @pl.when(pl.program_id(1) == 0)
    def _():
        out_ref[...] = jnp.zeros_like(out_ref)

    diff = bp_ref[...] - bg_ref[...]
    adiff = jnp.abs(diff)
    # F.smooth_l1_loss(..., reduction='none'), beta = 1.0
    sl1 = jnp.where(adiff < 1.0, 0.5 * diff * diff, adiff - 0.5)
    # loss weight and 1/(N*4) are hoisted to the wrapper; here only masked sum.
    out_ref[...] += jnp.sum(sl1 * m_ref[...], axis=0)[None, None, :]


def _to_lane_dense(flat, rows_padded):
    pad = rows_padded * LANE - flat.shape[0]
    return jnp.pad(flat, (0, pad)).reshape(rows_padded, LANE)


def _pallas_graph_loss(bp_flat, bg_flat, mask_flat, n_elems):
    """Masked smooth-L1 mean over flattened boxes via a tiled Pallas reduction."""
    total = bp_flat.shape[0]
    rows = max(1, -(-total // LANE))
    rows_per_core = -(-rows // NCORES)
    tile = min(MAX_TILE_ROWS, _round_up(rows_per_core, 8))   # (8,128)-aligned block
    tiles_per_core = -(-rows_per_core // tile)
    rows_padded = NCORES * tiles_per_core * tile

    # Padding contributes exactly 0: padded bp == bg == 0 -> sl1 == 0, mask == 0.
    bp = _to_lane_dense(bp_flat, rows_padded)
    bg = _to_lane_dense(bg_flat, rows_padded)
    mk = _to_lane_dense(mask_flat, rows_padded)

    in_spec = pl.BlockSpec((tile, LANE), lambda c, t: (c * tiles_per_core + t, 0))
    out_spec = pl.BlockSpec((1, 1, LANE), lambda c, t: (c, 0, 0))

    partials = pl.pallas_call(
        _graph_loss_sum_kernel,
        out_shape=jax.ShapeDtypeStruct((NCORES, 1, LANE), jnp.float32),
        grid=(NCORES, tiles_per_core),
        in_specs=[in_spec, in_spec, in_spec],
        out_specs=out_spec,
        compiler_params=pltpu.CompilerParams(
            dimension_semantics=("parallel", "arbitrary"),
            vmem_limit_bytes=32 * 1024 * 1024,
        ),
    )(bp, bg, mk)

    # finalize once: sum lanes/cores, apply weight and the true-element divisor.
    return jnp.sum(partials) * BBOX_PRED_LOSS_WEIGHT / jnp.float32(n_elems)


def compute_graph_loss(boxes_pred, boxes_gt, objs):
    """JAX/Pallas equivalent of LossModel.compute_graph_loss.

    boxes_pred, boxes_gt: [O, T, 4] float32
    objs:                 [O, 1, D] float32
    Returns dict with 'bbox_pred' and 'total_loss' scalars.
    """
    o, t, _ = boxes_pred.shape
    d = objs.shape[-1]
    n_elems = o * (t - 1) * 4  # true element count for the mean (T==1 -> NaN, as in torch)

    # drop frame 0 and flatten (matches .contiguous().view(-1, 4))
    bp_flat = boxes_pred[:, 1:].astype(jnp.float32).reshape(-1)
    bg_flat = boxes_gt[:, 1:].astype(jnp.float32).reshape(-1)

    # "is real object" mask computed on O values in the wrapper (no [N, D] DMA):
    #   D > 1 : sum over embedding dim != 0   |   D == 1 : value != 0
    if d > 1:
        obj_real = jnp.sum(objs, axis=-1) != 0          # (O, 1)
    else:
        obj_real = objs[..., 0] != 0                    # (O, 1)
    mask_flat = jnp.broadcast_to(
        obj_real[:, :, None].astype(jnp.float32), (o, t - 1, 4)
    ).reshape(-1)

    bbox_pred = _pallas_graph_loss(bp_flat, bg_flat, mask_flat, n_elems)
    losses = {"bbox_pred": bbox_pred}
    losses["total_loss"] = jnp.stack(list(losses.values()), axis=0).sum()
    return losses


def _reference_graph_loss(boxes_pred, boxes_gt, objs):
    """Pure-JAX reference mirroring the PyTorch code, for a sanity check."""
    t = boxes_pred.shape[1]
    d = objs.shape[-1]
    bp = boxes_pred[:, 1:].reshape(-1, 4)
    bg = boxes_gt[:, 1:].reshape(-1, 4)
    diff = bp - bg
    ad = jnp.abs(diff)
    sl1 = jnp.where(ad < 1.0, 0.5 * diff * diff, ad - 0.5) * BBOX_PRED_LOSS_WEIGHT
    fo = jnp.repeat(objs[:, None], t - 1, axis=1).reshape(-1, d)
    mask = (jnp.sum(fo, axis=1, keepdims=True) != 0).astype(jnp.float32)
    return jnp.mean(sl1 * mask)


# TODO(synk): compute_generator_loss / compute_discriminator_loss depend on external
# discriminator networks, GANLoss, VGGLoss and a flow-resample op — no self-contained
# Pallas equivalent from this module alone; only compute_graph_loss is implemented.

if __name__ == "__main__":
    key = jax.random.PRNGKey(0)
    k1, k2, k3 = jax.random.split(key, 3)

    O, T, D = 8, 9, 16  # 8 objects, 9 frames, 16-dim object vectors  -> N = 64
    boxes_gt = jax.random.uniform(k1, (O, T, 4), dtype=jnp.float32)
    boxes_pred = boxes_gt + 0.3 * jax.random.normal(k2, (O, T, 4), dtype=jnp.float32)
    objs = jax.random.normal(k3, (O, 1, D), dtype=jnp.float32)
    # make a couple of objects "not real" (all-zero embedding) to exercise the mask
    objs = objs.at[1].set(0.0).at[5].set(0.0)

    losses = compute_graph_loss(boxes_pred, boxes_gt, objs)
    jax.block_until_ready(losses["total_loss"])

    ref = _reference_graph_loss(boxes_pred, boxes_gt, objs)
    assert jnp.allclose(losses["bbox_pred"], ref, rtol=1e-5, atol=1e-6), (
        losses["bbox_pred"], ref)
    assert jnp.allclose(losses["total_loss"], ref, rtol=1e-5, atol=1e-6)

    print("KERNEL_OK")
</pallas_src>

<mosaic_0001>
module attributes {stable_mosaic.version = 11 : i64} {
  func.func @_graph_loss_sum_kernel(%arg0: i32, %arg1: i32, %arg2: memref<8x128xf32, #tpu.memory_space<vmem>>, %arg3: memref<8x128xf32, #tpu.memory_space<vmem>>, %arg4: memref<8x128xf32, #tpu.memory_space<vmem>>, %arg5: memref<1x1x128xf32, #tpu.memory_space<vmem>>) attributes {dimension_semantics = [#tpu.dimension_semantics<parallel>, #tpu.dimension_semantics<arbitrary>], iteration_bounds = array<i64: 2, 1>, scalar_prefetch = 0 : i64, scratch_operands = 0 : i64, tpu.core_type = #tpu.core_type<tc>, window_params = [{transform_indices = @transform_0, window_bounds = array<i64: 8, 128>}, {transform_indices = @transform_1, window_bounds = array<i64: 8, 128>}, {transform_indices = @transform_2, window_bounds = array<i64: 8, 128>}, {transform_indices = @transform_3, window_bounds = array<i64: 1, 1, 128>}]} {
    %c0_i32 = arith.constant 0 : i32
    %0 = arith.cmpi eq, %arg1, %c0_i32 : i32
    %1 = arith.extui %0 : i1 to i32
    %c0_i32_0 = arith.constant 0 : i32
    %2 = arith.cmpi ne, %1, %c0_i32_0 : i32
    scf.if %2 {
      %cst_15 = arith.constant 0.000000e+00 : f32
      %22 = vector.broadcast %cst_15 : f32 to vector<1x1x128xf32>
      %c0_16 = arith.constant 0 : index
      %c0_17 = arith.constant 0 : index
      %c0_18 = arith.constant 0 : index
      %23 = vector.load %arg5[%c0_16, %c0_17, %c0_18] : memref<1x1x128xf32, #tpu.memory_space<vmem>>, vector<1x1x128xf32>
      tpu.vector_store %arg5[%c0_16, %c0_17, %c0_18], %22 {strides = array<i32>} : memref<1x1x128xf32, #tpu.memory_space<vmem>>, vector<1x1x128xf32>,
    } else {
    }
    %c0 = arith.constant 0 : index
    %c0_1 = arith.constant 0 : index
    %3 = vector.load %arg2[%c0, %c0_1] : memref<8x128xf32, #tpu.memory_space<vmem>>, vector<8x128xf32>
    %c0_2 = arith.constant 0 : index
    %c0_3 = arith.constant 0 : index
    %4 = vector.load %arg3[%c0_2, %c0_3] : memref<8x128xf32, #tpu.memory_space<vmem>>, vector<8x128xf32>
    %5 = arith.subf %3, %4 : vector<8x128xf32>
    %6 = math.absf %5 : vector<8x128xf32>
    %cst = arith.constant 1.000000e+00 : f32
    %7 = vector.broadcast %cst : f32 to vector<8x128xf32>
    %8 = arith.cmpf olt, %6, %7 : vector<8x128xf32>
    %cst_4 = arith.constant 5.000000e-01 : f32
    %9 = vector.broadcast %cst_4 : f32 to vector<8x128xf32>
    %10 = arith.mulf %9, %5 : vector<8x128xf32>
    %11 = arith.mulf %10, %5 : vector<8x128xf32>
    %cst_5 = arith.constant 5.000000e-01 : f32
    %12 = vector.broadcast %cst_5 : f32 to vector<8x128xf32>
    %13 = arith.subf %6, %12 : vector<8x128xf32>
    %14 = arith.select %8, %11, %13 : vector<8x128xi1>, vector<8x128xf32>
    %c0_6 = arith.constant 0 : index
    %c0_7 = arith.constant 0 : index
    %c0_8 = arith.constant 0 : index
    %15 = vector.load %arg5[%c0_6, %c0_7, %c0_8] : memref<1x1x128xf32, #tpu.memory_space<vmem>>, vector<1x1x128xf32>
    %c0_9 = arith.constant 0 : index
    %c0_10 = arith.constant 0 : index
    %16 = vector.load %arg4[%c0_9, %c0_10] : memref<8x128xf32, #tpu.memory_space<vmem>>, vector<8x128xf32>
    %17 = arith.mulf %14, %16 : vector<8x128xf32>
    %cst_11 = arith.constant dense<0.000000e+00> : vector<128xf32>
    %18 = vector.multi_reduction <add>, %17, %cst_11 [0] : vector<8x128xf32> to vector<128xf32>
    %19 = vector.shape_cast %18 : vector<128xf32> to vector<1x1x128xf32>
    %20 = arith.addf %15, %19 : vector<1x1x128xf32>
    %c0_12 = arith.constant 0 : index
    %c0_13 = arith.constant 0 : index
    %c0_14 = arith.constant 0 : index
    %21 = vector.load %arg5[%c0_12, %c0_13, %c0_14] : memref<1x1x128xf32, #tpu.memory_space<vmem>>, vector<1x1x128xf32>
    tpu.vector_store %arg5[%c0_12, %c0_13, %c0_14], %20 {strides = array<i32>} : memref<1x1x128xf32, #tpu.memory_space<vmem>>, vector<1x1x128xf32>,
    return
  }
  func.func @transform_0(%arg0: i32, %arg1: i32) -> (i32, i32) {
    %c1_i32 = arith.constant 1 : i32
    %0 = arith.muli %arg0, %c1_i32 : i32
    %1 = arith.addi %0, %arg1 : i32
    %c0_i32 = arith.constant 0 : i32
    %c0_i32_0 = arith.constant 0 : i32
    return %1, %c0_i32 : i32, i32
  }
  func.func @transform_1(%arg0: i32, %arg1: i32) -> (i32, i32) {
    %c1_i32 = arith.constant 1 : i32
    %0 = arith.muli %arg0, %c1_i32 : i32
    %1 = arith.addi %0, %arg1 : i32
    %c0_i32 = arith.constant 0 : i32
    %c0_i32_0 = arith.constant 0 : i32
    return %1, %c0_i32 : i32, i32
  }
  func.func @transform_2(%arg0: i32, %arg1: i32) -> (i32, i32) {
    %c1_i32 = arith.constant 1 : i32
    %0 = arith.muli %arg0, %c1_i32 : i32
    %1 = arith.addi %0, %arg1 : i32
    %c0_i32 = arith.constant 0 : i32
    %c0_i32_0 = arith.constant 0 : i32
    return %1, %c0_i32 : i32, i32
  }
  func.func @transform_3(%arg0: i32, %arg1: i32) -> (i32, i32, i32) {
    %c0_i32 = arith.constant 0 : i32
    %c0_i32_0 = arith.constant 0 : i32
    %c0_i32_1 = arith.constant 0 : i32
    return %arg0, %c0_i32, %c0_i32_0 : i32, i32, i32
  }
}

</mosaic_0001>

<llo_original>
// kernel: tpu_custom_call.1
$region0: #{tpu_custom_call.1}
  #allocation0 [shape = 'u32[]', space=smem, size = 0x4, offset = 0x4, fixed_abs, tag = 'smem constant byte address 0x4 - core index']
  #allocation1 [shape = 'u32[72,128]{1,0:T(1,128)}', space=vmem, size = 0x9000, scoped, tag = 'internal scratch']
  %s0 = inlined_call_operand.hbm [shape: f32[16,128], index: 0, kind: input, shape index: {}]
  %s1 = inlined_call_operand.hbm [shape: f32[16,128], index: 1, kind: input, shape index: {}]
  %s2 = inlined_call_operand.hbm [shape: f32[16,128], index: 2, kind: input, shape index: {}]
  %s3 = inlined_call_operand.hbm [shape: f32[2,1,128], index: 3, kind: output, shape index: {}]
  %s4 = sld [smem:[#allocation0]]
  $region61: #{tpu_custom_call.1} parent=0
    _
  %s6 = ssub.s32 1, %s4
  %s7 = scalar_select 0, %s6, %s4
  $region1: #{tpu_custom_call.1} parent=0
    #allocation2 [shape = 'u8[8192]{0}', space=vmem, size = 0x2000, scoped, tag = 'input window, operand 0']
    #allocation3 [shape = 's32[2]{0}', space=sflag, size = 0x8, scoped, tag = 'scoped memory for tpu_custom_call.1']
    #allocation4 [shape = 's32[2]{0}', space=sflag, size = 0x8, scoped, tag = 'scoped memory for tpu_custom_call.1']
    #allocation5 [shape = 'u8[8192]{0}', space=vmem, size = 0x2000, scoped, tag = 'input window, operand 1']
    #allocation6 [shape = 's32[2]{0}', space=sflag, size = 0x8, scoped, tag = 'scoped memory for tpu_custom_call.1']
    #allocation7 [shape = 'u8[8192]{0}', space=vmem, size = 0x2000, scoped, tag = 'input window, operand 2']
    #allocation8 [shape = 'u8[1024]{0}', space=vmem, size = 0x400, scoped, tag = 'output window, operand 0']
    %8 = vsyncpa [#allocation3], 0
    %s9 = scalar_lea.sflag [#allocation3], 1
    %10 = vsyncpa %s9, 0
    %11 = vsyncpa [#allocation6], 0
    %s12 = scalar_lea.sflag [#allocation6], 1
    %13 = vsyncpa %s12, 0
    %14 = vsyncpa [#allocation4], 0
    %s15 = scalar_lea.sflag [#allocation4], 1
    %16 = vsyncpa %s15, 0
    loop: start=0, step=1, limit=4
    $region2: #{tpu_custom_call.1} parent=1 // loop_pre_header
      _
    $region3: #{tpu_custom_call.1} parent=1 // loop_header
      %s18 = sphi 0, %s22
      %p19 = scmp.ge.s32.totalorder %s18, 4
      %s25 = sphi 0, %s37
      %s26 = sphi 0, %s33
      %s27 = sphi 0, %s25
      %s28 = sphi 0, %s26
      %s29 = sphi 0, %s27
      %s30 = sphi 0, %s28
      %s42 = sphi 0, %s44
      %s45 = sphi 0, %s42
      %s46 = sphi 0, %s45
      %s62 = sphi 0, %s46
      %s70 = sphi 0, %s72
      %s73 = sphi 0, %s70
      %s74 = sphi 0, %s73
      %s90 = sphi 0, %s74
      %s98 = sphi 0, %s100
      %s101 = sphi 0, %s98
      %s102 = sphi 0, %s101
      %s118 = sphi 0, %s102
      %s124 = sphi 0, %s126
      %s127 = sphi 0, %s124
      %s128 = sphi 0, %s127
      %s144 = sphi 0, %s128
    $region4: #{tpu_custom_call.1} parent=1 // loop_header_branch
      %21 = sbr.rel (%p19) target = $region8
    $region5: #{tpu_custom_call.1} parent=1 // loop_body
      %s23 = ssub.s32 %s18, 1
      %s24 = ssub.s32 %s18, 2
      %s31 = sadd.s32 1, %s26
      %p32 = scmp.ge.s32.totalorder %s31, 1
      %s33 = scalar_select %p32, 0, %s31
      %s34 = sadd.s32 1, %s25
      %s35 = scalar_select %p32, %s34, %s25
      %p36 = scmp.ge.s32.totalorder %s35, 2
      %s37 = scalar_select %p36, 0, %s35
      %s38 = sadd.s32 %s25, %s26
      %s39 = sadd.s32 %s37, %s33
      %s40 = ssub.s32 %s38, %s39
      %p41 = scmp.eq.s32.totalorder %s40, 0
      %s43 = sadd.s32 %s42, 1
      %s44 = scalar_select %p41, %s42, %s43
      %p47 = pneg %p41
      %p48 = scmp.eq.s32.totalorder %s18, 1
      %p49 = por %p47, %p48
      %p50 = scmp.ne.s32.totalorder %s42, %s45
      %p51 = scmp.eq.s32.totalorder %s18, 0
      %p52 = por %p50, %p51
      %p53 = scmp.ne.s32.totalorder %s42, %s45
      %p54 = scmp.eq.s32.totalorder %s23, 1
      %p55 = por %p53, %p54
      %p56 = scmp.ne.s32.totalorder %s45, %s46
      %p57 = scmp.eq.s32.totalorder %s23, 0
      %p58 = por %p56, %p57
      %p59 = scmp.ne.s32.totalorder %s45, %s46
      %p60 = scmp.eq.s32.totalorder %s24, 1
      %p61 = por %p59, %p60
      %p63 = scmp.ne.s32.totalorder %s46, %s62
      %p64 = scmp.eq.s32.totalorder %s24, 0
      %p65 = por %p63, %p64
      %s66 = sadd.s32 %s25, %s26
      %s67 = sadd.s32 %s37, %s33
      %s68 = ssub.s32 %s66, %s67
      %p69 = scmp.eq.s32.totalorder %s68, 0
      %s71 = sadd.s32 %s70, 1
      %s72 = scalar_select %p69, %s70, %s71
      %p75 = pneg %p69
      %p76 = scmp.eq.s32.totalorder %s18, 1
      %p77 = por %p75, %p76
      %p78 = scmp.ne.s32.totalorder %s70, %s73
      %p79 = scmp.eq.s32.totalorder %s18, 0
      %p80 = por %p78, %p79
      %p81 = scmp.ne.s32.totalorder %s70, %s73
      %p82 = scmp.eq.s32.totalorder %s23, 1
      %p83 = por %p81, %p82
      %p84 = scmp.ne.s32.totalorder %s73, %s74
      %p85 = scmp.eq.s32.totalorder %s23, 0
      %p86 = por %p84, %p85
      %p87 = scmp.ne.s32.totalorder %s73, %s74
      %p88 = scmp.eq.s32.totalorder %s24, 1
      %p89 = por %p87, %p88
      %p91 = scmp.ne.s32.totalorder %s74, %s90
      %p92 = scmp.eq.s32.totalorder %s24, 0
      %p93 = por %p91, %p92
      %s94 = sadd.s32 %s25, %s26
      %s95 = sadd.s32 %s37, %s33
      %s96 = ssub.s32 %s94, %s95
      %p97 = scmp.eq.s32.totalorder %s96, 0
      %s99 = sadd.s32 %s98, 1
      %s100 = scalar_select %p97, %s98, %s99
      %p103 = pneg %p97
      %p104 = scmp.eq.s32.totalorder %s18, 1
      %p105 = por %p103, %p104
      %p106 = scmp.ne.s32.totalorder %s98, %s101
      %p107 = scmp.eq.s32.totalorder %s18, 0
      %p108 = por %p106, %p107
      %p109 = scmp.ne.s32.totalorder %s98, %s101
      %p110 = scmp.eq.s32.totalorder %s23, 1
      %p111 = por %p109, %p110
      %p112 = scmp.ne.s32.totalorder %s101, %s102
      %p113 = scmp.eq.s32.totalorder %s23, 0
      %p114 = por %p112, %p113
      %p115 = scmp.ne.s32.totalorder %s101, %s102
      %p116 = scmp.eq.s32.totalorder %s24, 1
      %p117 = por %p115, %p116
      %p119 = scmp.ne.s32.totalorder %s102, %s118
      %p120 = scmp.eq.s32.totalorder %s24, 0
      %p121 = por %p119, %p120
      %s122 = ssub.s32 %s25, %s37
      %p123 = scmp.eq.s32.totalorder %s122, 0
      %s125 = sadd.s32 %s124, 1
      %s126 = scalar_select %p123, %s124, %s125
      %p129 = pneg %p123
      %p130 = scmp.eq.s32.totalorder %s18, 1
      %p131 = por %p129, %p130
      %p132 = scmp.ne.s32.totalorder %s124, %s127
      %p133 = scmp.eq.s32.totalorder %s18, 0
      %p134 = por %p132, %p133
      %p135 = scmp.ne.s32.totalorder %s124, %s127
      %p136 = scmp.eq.s32.totalorder %s23, 1
      %p137 = por %p135, %p136
      %p138 = scmp.ne.s32.totalorder %s127, %s128
      %p139 = scmp.eq.s32.totalorder %s23, 0
      %p140 = por %p138, %p139
      %p141 = scmp.ne.s32.totalorder %s127, %s128
      %p142 = scmp.eq.s32.totalorder %s24, 1
      %p143 = por %p141, %p142
      %p145 = scmp.ne.s32.totalorder %s128, %s144
      %p146 = scmp.eq.s32.totalorder %s24, 0
      %p147 = por %p145, %p146
      %p148 = scmp.le.s32.totalorder 1, %s18
      %p149 = scmp.lt.s32.totalorder %s18, 3
      %p150 = pnand %p148, %p149
      %p151 = pneg %p150
      // Predicated region
      $region9: #{tpu_custom_call.1} parent=5 // pred_check
        _
      $region10: #{tpu_custom_call.1} parent=5 // pred_check_branch
        %153 = sbr.rel (%p150) target = $region12
      $region11: #{tpu_custom_call.1} parent=5 // pred_region
        %s154 = ssub.s32 %s18, 1
      $region12: #{tpu_custom_call.1} parent=5 // pred_fallthru
        _
      %p155 = scmp.lt.s32.totalorder %s18, 2
      // Predicated region
      $region13: #{tpu_custom_call.1} parent=5 // pred_check
        %p156 = pneg %p155
      $region14: #{tpu_custom_call.1} parent=5 // pred_check_branch
        %158 = sbr.rel (%p156) target = $region16
      $region15: #{tpu_custom_call.1} parent=5 // pred_region
        // Predicated region
        $region17: #{tpu_custom_call.1} parent=15 // pred_check
          %p159 = pneg %p52
        $region18: #{tpu_custom_call.1} parent=15 // pred_check_branch
          %161 = sbr.rel (%p159) target = $region20
        $region19: #{tpu_custom_call.1} parent=15 // pred_region
          %s162 = sand.u32 %s42, 1
          %s163 = scalar_lea.sflag [#allocation3], %s162
          %s164 = sand.u32 %s42, 1
          %s165 = smul.addr %s164, 8
          %s166 = scalar_lea.vmem [#allocation2], %s165
          %s167 = sadd.s32 %s25, %s26
          %169 = vsyncadd %s163, 0
          %s170 = smul.addr %s167, 8
          %s171 = scalar_lea.hbm %s0, %s170
          %s173 = sshll.u32 %s171, 4
          %s174 = int_to_ptr.hbm [resolvable:$true] %s173
          %s175 = sshll.u32 %s166, 4
          %s176 = int_to_ptr.vmem [resolvable:$true] %s175
          %178 = dma.hbm_to_vmem [thread:$0]  %s174, 128, %s176, %s163
        $region20: #{tpu_custom_call.1} parent=15 // pred_fallthru
          _
        // Predicated region
        $region21: #{tpu_custom_call.1} parent=15 // pred_check
          %p179 = pneg %p80
        $region22: #{tpu_custom_call.1} parent=15 // pred_check_branch
          %181 = sbr.rel (%p179) target = $region24
        $region23: #{tpu_custom_call.1} parent=15 // pred_region
          %s182 = sand.u32 %s18, 1
          %s183 = scalar_lea.sflag [#allocation6], %s182
          %s184 = sand.u32 %s70, 1
          %s185 = smul.addr %s184, 8
          %s186 = scalar_lea.vmem [#allocation5], %s185
          %s187 = sadd.s32 %s25, %s26
          %189 = vsyncadd %s183, 0
          %s190 = smul.addr %s187, 8
          %s191 = scalar_lea.hbm %s1, %s190
          %s193 = sshll.u32 %s191, 4
          %s194 = int_to_ptr.hbm [resolvable:$true] %s193
          %s195 = sshll.u32 %s186, 4
          %s196 = int_to_ptr.vmem [resolvable:$true] %s195
          %198 = dma.hbm_to_vmem [thread:$0]  %s194, 128, %s196, %s183
        $region24: #{tpu_custom_call.1} parent=15 // pred_fallthru
          _
        // Predicated region
        $region25: #{tpu_custom_call.1} parent=15 // pred_check
          %p199 = pneg %p108
        $region26: #{tpu_custom_call.1} parent=15 // pred_check_branch
          %201 = sbr.rel (%p199) target = $region28
        $region27: #{tpu_custom_call.1} parent=15 // pred_region
          %s202 = sand.u32 %s18, 1
          %s203 = scalar_lea.sflag [#allocation6], %s202
          %s204 = sand.u32 %s98, 1
          %s205 = smul.addr %s204, 8
          %s206 = scalar_lea.vmem [#allocation7], %s205
          %s207 = sadd.s32 %s25, %s26
          %209 = vsyncadd %s203, 0
          %s210 = smul.addr %s207, 8
          %s211 = scalar_lea.hbm %s2, %s210
          %s213 = sshll.u32 %s211, 4
          %s214 = int_to_ptr.hbm [resolvable:$true] %s213
          %s215 = sshll.u32 %s206, 4
          %s216 = int_to_ptr.vmem [resolvable:$true] %s215
          %218 = dma.hbm_to_vmem [thread:$0]  %s214, 128, %s216, %s203
        $region28: #{tpu_custom_call.1} parent=15 // pred_fallthru
          _
      $region16: #{tpu_custom_call.1} parent=5 // pred_fallthru
        _
      %p219 = scmp.le.s32.totalorder 1, %s18
      %p220 = scmp.lt.s32.totalorder %s18, 3
      %p221 = pnand %p219, %p220
      %p222 = pneg %p221
      // Predicated region
      $region29: #{tpu_custom_call.1} parent=5 // pred_check
        _
      $region30: #{tpu_custom_call.1} parent=5 // pred_check_branch
        %224 = sbr.rel (%p221) target = $region32
      $region31: #{tpu_custom_call.1} parent=5 // pred_region
        %s225 = ssub.s32 %s18, 1
        %s226 = sand.u32 %s45, 1
        %s227 = scalar_lea.sflag [#allocation3], %s226
        %s228 = sand.u32 %s45, 1
        %s229 = smul.addr %s228, 8
        %s230 = scalar_lea.vmem [#allocation2], %s229
        // Predicated region
        $region33: #{tpu_custom_call.1} parent=31 // pred_check
          %p231 = pneg %p58
        $region34: #{tpu_custom_call.1} parent=31 // pred_check_branch
          %233 = sbr.rel (%p231) target = $region36
        $region35: #{tpu_custom_call.1} parent=31 // pred_region
          %235 = dma.done %s227, 128
        $region36: #{tpu_custom_call.1} parent=31 // pred_fallthru
          _
        %s236 = sand.u32 %s23, 1
        %s237 = scalar_lea.sflag [#allocation6], %s236
        %s238 = sand.u32 %s73, 1
        %s239 = smul.addr %s238, 8
        %s240 = scalar_lea.vmem [#allocation5], %s239
        // Predicated region
        $region37: #{tpu_custom_call.1} parent=31 // pred_check
          %p241 = pneg %p86
        $region38: #{tpu_custom_call.1} parent=31 // pred_check_branch
          %243 = sbr.rel (%p241) target = $region40
        $region39: #{tpu_custom_call.1} parent=31 // pred_region
          %245 = dma.done %s237, 128
        $region40: #{tpu_custom_call.1} parent=31 // pred_fallthru
          _
        %s246 = sand.u32 %s23, 1
        %s247 = scalar_lea.sflag [#allocation6], %s246
        %s248 = sand.u32 %s101, 1
        %s249 = smul.addr %s248, 8
        %s250 = scalar_lea.vmem [#allocation7], %s249
        // Predicated region
        $region41: #{tpu_custom_call.1} parent=31 // pred_check
          %p251 = pneg %p114
        $region42: #{tpu_custom_call.1} parent=31 // pred_check_branch
          %253 = sbr.rel (%p251) target = $region44
        $region43: #{tpu_custom_call.1} parent=31 // pred_region
          %255 = dma.done %s247, 128
        $region44: #{tpu_custom_call.1} parent=31 // pred_fallthru
          _
        %s256 = sand.u32 %s45, 1
        %s257 = scalar_lea.sflag [#allocation3], %s256
        %s258 = sand.u32 %s45, 1
        %s259 = smul.addr %s258, 8
        %s260 = scalar_lea.vmem [#allocation2], %s259
        %p261 = pneg %p58
        %p262 = pneg %p55
        %s263 = sand.u32 %s23, 1
        %s264 = scalar_lea.sflag [#allocation6], %s263
        %s265 = sand.u32 %s73, 1
        %s266 = smul.addr %s265, 8
        %s267 = scalar_lea.vmem [#allocation5], %s266
        %p268 = pneg %p86
        %p269 = pneg %p83
        %s270 = sand.u32 %s23, 1
        %s271 = scalar_lea.sflag [#allocation6], %s270
        %s272 = sand.u32 %s101, 1
        %s273 = smul.addr %s272, 8
        %s274 = scalar_lea.vmem [#allocation7], %s273
        %p275 = pneg %p114
        %p276 = pneg %p111
        %p277 = pneg %p140
        %p278 = pneg %p137
        %s279 = sand.u32 %s127, 1
        %s280 = scalar_lea.sflag [#allocation4], %s279
        %s281 = sand.u32 %s127, 1
        %s282 = scalar_lea.vmem [#allocation8], %s281
        %s283 = sadd.s32 %s27, %s28
        %s284 = sadd.s32 %s27, %s28
        %s285 = sadd.s32 %s27, %s28
        %p286 = scmp.eq.s32.totalorder %s28, 0
        // Predicated region
        $region45: #{tpu_custom_call.1} parent=31 // pred_check
          %p287 = pneg %p286
        $region46: #{tpu_custom_call.1} parent=31 // pred_check_branch
          %289 = sbr.rel (%p287) target = $region48
        $region47: #{tpu_custom_call.1} parent=31 // pred_region
          %290 = vst [vmem:[%s282] sm:$0x1] 0.0
        $region48: #{tpu_custom_call.1} parent=31 // pred_fallthru
          _
        %v291 = vld [vmem:[%s230] sm:$0xff]
        %v292 = vld [vmem:[%s240] sm:$0xff]
        %v293 = vsub.f32 %v291, %v292
        %v294 = vand.u32 2147483647, %v293
        %vm295 = vcmp.lt.f32.partialorder %v294, 1.0
        %v296 = vmul.f32 %v293, 0.5
        %v297 = vmul.f32 %v296, %v293
        %v298 = vsub.f32 %v294, 0.5
        %v299 = vsel %vm295, %v297, %v298
        %v300 = vld [vmem:[%s282] sm:$0x1]
        %v301 = vld [vmem:[%s250] sm:$0xff]
        %v302 = vmul.f32 %v299, %v301
        %v303 = vrot.slane %v302, 4
        %v304 = vadd.f32 %v302, %v303
        %v305 = vrot.slane %v304, 2
        %v306 = vadd.f32 %v304, %v305
        %v307 = vrot.slane %v306, 1
        %v308 = vadd.f32 %v306, %v307
        %v309 = vadd.f32 %v300, %v308
        %310 = vst [vmem:[%s282] sm:$0x1] %v309
        %s311 = sand.u32 %s127, 1
        %s312 = scalar_lea.sflag [#allocation4], %s311
        %s313 = sand.u32 %s127, 1
        %s314 = scalar_lea.vmem [#allocation8], %s313
        // Predicated region
        $region49: #{tpu_custom_call.1} parent=31 // pred_check
          %p315 = pneg %p137
        $region50: #{tpu_custom_call.1} parent=31 // pred_check_branch
          %317 = sbr.rel (%p315) target = $region52
        $region51: #{tpu_custom_call.1} parent=31 // pred_region
          %319 = vsyncadd %s312, 0
          %s320 = scalar_lea.hbm %s3, %s27
          %s322 = sshll.u32 %s314, 4
          %s323 = int_to_ptr.vmem [resolvable:$true] %s322
          %s324 = sshll.u32 %s320, 4
          %s325 = int_to_ptr.hbm [resolvable:$true] %s324
          %327 = dma.vmem_to_hbm [thread:$0]  %s323, 16, %s325, %s312
        $region52: #{tpu_custom_call.1} parent=31 // pred_fallthru
          _
      $region32: #{tpu_custom_call.1} parent=5 // pred_fallthru
        _
      %p328 = scmp.le.s32.totalorder 2, %s18
      // Predicated region
      $region53: #{tpu_custom_call.1} parent=5 // pred_check
        %p329 = pneg %p328
      $region54: #{tpu_custom_call.1} parent=5 // pred_check_branch
        %331 = sbr.rel (%p329) target = $region56
      $region55: #{tpu_custom_call.1} parent=5 // pred_region
        %s332 = ssub.s32 %s18, 2
        // Predicated region
        $region57: #{tpu_custom_call.1} parent=55 // pred_check
          %p333 = pneg %p143
        $region58: #{tpu_custom_call.1} parent=55 // pred_check_branch
          %335 = sbr.rel (%p333) target = $region60
        $region59: #{tpu_custom_call.1} parent=55 // pred_region
          %s336 = sand.u32 %s128, 1
          %s337 = scalar_lea.sflag [#allocation4], %s336
          %s338 = sand.u32 %s128, 1
          %s339 = scalar_lea.vmem [#allocation8], %s338
          %341 = dma.done %s337, 16
        $region60: #{tpu_custom_call.1} parent=55 // pred_fallthru
          _
      $region56: #{tpu_custom_call.1} parent=5 // pred_fallthru
        _
    $region6: #{tpu_custom_call.1} parent=1 // loop_footer
      %s22 = sadd.s32 1, %s18
    $region7: #{tpu_custom_call.1} parent=1 // loop_footer_branch
      %17 = sbr.rel target = $region3
    $region8: #{tpu_custom_call.1} parent=1 // loop_exit
      _
    %342 = vsyncpa [#allocation3], 1
    %s343 = scalar_lea.sflag [#allocation3], 1
    %344 = vsyncpa %s343, 1
    %345 = vsyncpa [#allocation6], 1
    %s346 = scalar_lea.sflag [#allocation6], 1
    %347 = vsyncpa %s346, 1
    %348 = vsyncpa [#allocation4], 1
    %s349 = scalar_lea.sflag [#allocation4], 1
    %350 = vsyncpa %s349, 1

</llo_original>
